<compile_context>
chip_gen: v7x
topology: tpu7x:2x2x1
jax: 0.10.0
libtpu: 0.0.40
codegen_flags: <defaults>
</compile_context>

<pallas_src>
import functools
import math

import jax
import jax.numpy as jnp
from jax.experimental import pallas as pl
from jax.experimental.pallas import tpu as pltpu


def _int_pow(x, n):
    """x ** n for integer n >= 1 via exponentiation-by-squaring (VPU only)."""
    result = None
    base = x
    while n > 0:
        if n & 1:
            result = base if result is None else result * base
        n >>= 1
        if n:
            base = base * base
    return result


def _gem_kernel(x_ref, o_ref, *, p, p_int, eps, inv_p, root_bias):
    # x_ref: (TR, H*W) tile in VMEM ; o_ref: (TR, 1)
    x = jnp.maximum(x_ref[...].astype(jnp.float32), eps)     # clamp(min=eps) -> x > 0
    if p_int is not None:
        xp = _int_pow(x, p_int)          # VPU multiply chain; keeps the single EUP slot free
    else:
        xp = jnp.exp(p * jnp.log(x))     # generic positive real exponent
    s = jnp.sum(xp, axis=-1, keepdims=True)                  # spatial sum ( > 0 for real rows)
    # mean ** (1/(p+eps)) == exp(inv_p * log(s) + inv_p * log(1/hw)); root_bias precomputed.
    o_ref[...] = jnp.exp(inv_p * jnp.log(s) + root_bias).astype(o_ref.dtype)


def gem_pooling(x, norm=3.0, eps=1e-6, *, target_tile_bytes=2 * 1024 * 1024):
    """Generalized-mean pooling with output_size=1 (global GeM)."""
    # TODO(synk): general output_size > 1 (adaptive pooling windows) not implemented;
    # the fast-reid module is used with the default output_size=1.
    p = float(norm)
    N, C, H, W = x.shape
    rows = N * C
    hw = H * W
    x2 = x.reshape(rows, hw)

    itemsize = jnp.dtype(x.dtype).itemsize
    sublane = max(8, 32 // itemsize)           # f32: 8, bf16: 16, int8/fp8: 32
    # Row tile targeting ~2 MiB per input buffer (double-buffered -> ~4 MiB), which
    # fits the scoped-VMEM defaults on v5e (16 MiB) / v6e (32 MiB) / v7x (32 MiB)
    # while still amortizing the ~0.35 us per-grid-step overhead.
    tr = max(sublane, (target_tile_bytes // max(1, hw * itemsize)) // sublane * sublane)
    if rows <= tr:
        tr = rows                               # single block; full-extent dim is always legal
    grid = (pl.cdiv(rows, tr),)

    p_int = int(p) if p.is_integer() and p >= 1.0 else None
    inv_p = 1.0 / (p + eps)
    root_bias = -inv_p * math.log(hw)           # == inv_p * log(1/hw), folded into the root

    flops = (3 if p_int is not None else 2) * rows * hw
    transcendentals = (2 * rows) if p_int is not None else (2 * rows * hw + 2 * rows)
    bytes_accessed = rows * hw * itemsize + rows * itemsize

    out = pl.pallas_call(
        functools.partial(_gem_kernel, p=p, p_int=p_int, eps=eps,
                          inv_p=inv_p, root_bias=root_bias),
        out_shape=jax.ShapeDtypeStruct((rows, 1), x.dtype),
        grid_spec=pltpu.PrefetchScalarGridSpec(
            num_scalar_prefetch=0,
            grid=grid,
            in_specs=[pl.BlockSpec((tr, hw), lambda i: (i, 0))],
            out_specs=pl.BlockSpec((tr, 1), lambda i: (i, 0)),
        ),
        compiler_params=pltpu.CompilerParams(
            dimension_semantics=("parallel",),   # row tiles independent; shards across v7x TCs
            vmem_limit_bytes=32 * 1024 * 1024,
        ),
        cost_estimate=pl.CostEstimate(
            flops=flops,
            transcendentals=transcendentals,
            bytes_accessed=bytes_accessed,
        ),
    )(x2)
    return out.reshape(N, C, 1, 1)


if __name__ == "__main__":
    key = jax.random.PRNGKey(0)
    N, C, H, W = 2, 4, 16, 16
    x = jax.random.normal(key, (N, C, H, W), dtype=jnp.float32)

    y = gem_pooling(x, norm=3.0, eps=1e-6)
    y = jax.block_until_ready(y)

    # pure-JAX reference check (matches the PyTorch module's forward)
    p, eps = 3.0, 1e-6
    xr = jnp.maximum(x, eps) ** p
    ref = jnp.mean(xr, axis=(2, 3), keepdims=True) ** (1.0 / (p + eps))
    assert y.shape == (N, C, 1, 1)
    assert jnp.allclose(y, ref, rtol=1e-5, atol=1e-5), (y, ref)

    print("KERNEL_OK")
</pallas_src>

<mosaic_0001>
module attributes {stable_mosaic.version = 11 : i64} {
  func.func @_gem_kernel(%arg0: i32, %arg1: memref<8x256xf32, #tpu.memory_space<vmem>>, %arg2: memref<8x1xf32, #tpu.memory_space<vmem>>) attributes {dimension_semantics = [#tpu.dimension_semantics<parallel>], iteration_bounds = array<i64: 1>, scalar_prefetch = 0 : i64, scratch_operands = 0 : i64, tpu.core_type = #tpu.core_type<tc>, window_params = [{transform_indices = @transform_0, window_bounds = array<i64: 8, 256>}, {transform_indices = @transform_1, window_bounds = array<i64: 8, 1>}]} {
    %c0 = arith.constant 0 : index
    %c0_0 = arith.constant 0 : index
    %0 = vector.load %arg1[%c0, %c0_0] : memref<8x256xf32, #tpu.memory_space<vmem>>, vector<8x256xf32>
    %cst = arith.constant 9.99999997E-7 : f32
    %1 = vector.broadcast %cst : f32 to vector<8x256xf32>
    %2 = arith.maximumf %0, %1 : vector<8x256xf32>
    %3 = arith.mulf %2, %2 : vector<8x256xf32>
    %4 = arith.mulf %2, %3 : vector<8x256xf32>
    %cst_1 = arith.constant dense<0.000000e+00> : vector<8xf32>
    %5 = vector.multi_reduction <add>, %4, %cst_1 [1] : vector<8x256xf32> to vector<8xf32>
    %6 = vector.shape_cast %5 : vector<8xf32> to vector<8x1xf32>
    %7 = math.log %6 : vector<8x1xf32>
    %cst_2 = arith.constant 0.333333224 : f32
    %8 = vector.broadcast %cst_2 : f32 to vector<8x1xf32>
    %9 = arith.mulf %8, %7 : vector<8x1xf32>
    %cst_3 = arith.constant -1.84839189 : f32
    %10 = vector.broadcast %cst_3 : f32 to vector<8x1xf32>
    %11 = arith.addf %9, %10 : vector<8x1xf32>
    %12 = math.exp %11 : vector<8x1xf32>
    %c0_4 = arith.constant 0 : index
    %c0_5 = arith.constant 0 : index
    %13 = vector.load %arg2[%c0_4, %c0_5] : memref<8x1xf32, #tpu.memory_space<vmem>>, vector<8x1xf32>
    tpu.vector_store %arg2[%c0_4, %c0_5], %12 {strides = array<i32>} : memref<8x1xf32, #tpu.memory_space<vmem>>, vector<8x1xf32>,
    return
  }
  func.func @transform_0(%arg0: i32) -> (i32, i32) {
    %c0_i32 = arith.constant 0 : i32
    %c0_i32_0 = arith.constant 0 : i32
    return %arg0, %c0_i32 : i32, i32
  }
  func.func @transform_1(%arg0: i32) -> (i32, i32) {
    %c0_i32 = arith.constant 0 : i32
    %c0_i32_0 = arith.constant 0 : i32
    return %arg0, %c0_i32 : i32, i32
  }
}

</mosaic_0001>

<llo_original>
// kernel: tpu_custom_call.1
$region0: #{tpu_custom_call.1}
  #allocation0 [shape = 'u32[]', space=smem, size = 0x4, offset = 0x4, fixed_abs, tag = 'smem constant byte address 0x4 - core index']
  #allocation1 [shape = 'u32[144,128]{1,0:T(1,128)}', space=vmem, size = 0x12000, scoped, tag = 'internal scratch']
  %s0 = inlined_call_operand.hbm [shape: f32[8,256], index: 0, kind: input, shape index: {}]
  %s1 = inlined_call_operand.vmem [shape: f32[8,1], index: 1, kind: output, shape index: {}]
  %s2 = sld [smem:[#allocation0]]
  $region18: #{tpu_custom_call.1} parent=0
    _
  %s4 = ssub.s32 1, %s2
  %s5 = scalar_select 0, %s4, %s2
  $region1: #{tpu_custom_call.1} parent=0
    #allocation2 [shape = 'u8[8192]{0}', space=vmem, size = 0x2000, scoped, tag = 'input window, operand 0, single buffered']
    #allocation3 [shape = 's32[1]{0}', space=sflag, size = 0x4, scoped, tag = 'scoped memory for tpu_custom_call.1']
    %6 = vsyncpa [#allocation3], 0
    // Predicated region
    $region2: #{tpu_custom_call.1} parent=1 // pred_check
      _
    $region3: #{tpu_custom_call.1} parent=1 // pred_check_branch
      %8 = sbr.rel (0) target = $region5
    $region4: #{tpu_custom_call.1} parent=1 // pred_region
      %s10 = ssub.s32 256, 256
      %11 = vsyncadd [#allocation3], %s10
      %s13 = sshll.u32 [#allocation2], 4
      %s14 = int_to_ptr.vmem [resolvable:$true] %s13
      %16 = dma.hbm_to_vmem [thread:$0]  %s0, 256, %s14, [#allocation3]
    $region5: #{tpu_custom_call.1} parent=1 // pred_fallthru
      _
    // Predicated region
    $region6: #{tpu_custom_call.1} parent=1 // pred_check
      _
    $region7: #{tpu_custom_call.1} parent=1 // pred_check_branch
      %18 = sbr.rel (0) target = $region9
    $region8: #{tpu_custom_call.1} parent=1 // pred_region
      %19 = dma.done [#allocation3], 256
    $region9: #{tpu_custom_call.1} parent=1 // pred_fallthru
      _
    %v20 = vld [vmem:[#allocation2] sm:$0xff]
    %v21 = vld [vmem:[#allocation2 + $0x8] sm:$0xff]
    %v22 = vmax.f32 %v20, 1e-06
    %v23 = vmax.f32 %v21, 1e-06
    %v24 = vmul.f32 %v22, %v22
    %v25 = vmul.f32 %v23, %v23
    %v26 = vmul.f32 %v22, %v24
    %v27 = vmul.f32 %v23, %v25
    %v28 = vadd.f32 %v26, %v27
    %29 = vadd.xlane.f32.xlu0 %v28
    %v30 = vpop.xlane.xlu0 %29
    %v31 = vlog2.pop %v30
    %v32 = vmul.f32 %v31, 0.6931472
    %v33 = vmul.f32 %v32, 0.33333322
    %v34 = vadd.f32 %v33, -1.8483919
    %v35 = vmul.f32 %v34, 1.442695
    %v36 = vpow.pop %v35
    %vm37 = vcmask 7168
    %38 = vst.msk [vmem:[%s1] sm:$0xff] %vm37, %v36
    // Predicated region
    $region10: #{tpu_custom_call.1} parent=1 // pred_check
      _
    $region11: #{tpu_custom_call.1} parent=1 // pred_check_branch
      %40 = sbr.rel (0) target = $region13
    $region12: #{tpu_custom_call.1} parent=1 // pred_region
      _
    $region13: #{tpu_custom_call.1} parent=1 // pred_fallthru
      _
    // Predicated region
    $region14: #{tpu_custom_call.1} parent=1 // pred_check
      _
    $region15: #{tpu_custom_call.1} parent=1 // pred_check_branch
      %42 = sbr.rel (0) target = $region17
    $region16: #{tpu_custom_call.1} parent=1 // pred_region
      _
    $region17: #{tpu_custom_call.1} parent=1 // pred_fallthru
      _
    %43 = vsyncpa [#allocation3], 1

</llo_original>
